<compile_context>
chip_gen: v7x
topology: tpu7x:2x2x1
jax: 0.10.0
libtpu: 0.0.40
codegen_flags: <defaults>
</compile_context>

<pallas_src>
import jax
import jax.numpy as jnp
from jax.experimental import pallas as pl
from jax.experimental.pallas import tpu as pltpu


def _round_up(x: int, m: int) -> int:
    return (x + m - 1) // m * m


def _cdiv(a: int, b: int) -> int:
    return -(-a // b)


# -----------------------------------------------------------------------------
# Kernels
# -----------------------------------------------------------------------------
def _gemv_full_k_kernel(x_ref, w_ref, b_ref, o_ref):
    # x_ref: (block_m, K) VMEM   w_ref: (1, K) VMEM (resident, natural layout)
    # b_ref: (1,) SMEM scalar    o_ref: (1, 1, block_m) VMEM (lane-dense row)
    prod = x_ref[...].astype(jnp.float32) * w_ref[...].astype(jnp.float32)
    row = jnp.sum(prod, axis=1)                      # one XLU reduce per M tile
    o_ref[0] = (row[None, :] + b_ref[0]).astype(o_ref.dtype)


def _make_gemv_tiled_kernel(n_inputs: int, block_k: int):
    ragged_k = (n_inputs % block_k) != 0

    def kernel(x_ref, w_ref, b_ref, o_ref, acc_ref):
        # x_ref: (block_m, block_k)    w_ref: (1, k_padded) resident weight
        # b_ref: (1,) SMEM             o_ref: (1, 1, block_m)
        # acc_ref: (block_m, 128) f32 per-lane partial sums
        k = pl.program_id(1)

        @pl.when(k == 0)
        def _init():
            acc_ref[...] = jnp.zeros_like(acc_ref)

        off = pl.multiple_of(k * block_k, block_k)
        w = w_ref[:, pl.ds(off, block_k)].astype(jnp.float32)     # (1, block_k)
        prod = x_ref[...].astype(jnp.float32) * w                  # (bm, block_k)
        if ragged_k:
            col = jax.lax.broadcasted_iota(jnp.int32, prod.shape, 1) + k * block_k
            prod = jnp.where(col < n_inputs, prod, 0.0)

        bm = prod.shape[0]
        # VPU-only fold of 128-lane sub-blocks; no XLU / relayout in the K loop.
        partial = prod.reshape(bm, block_k // 128, 128).sum(axis=1)  # (bm, 128)
        acc_ref[...] = acc_ref[...] + partial

        @pl.when(k == pl.num_programs(1) - 1)
        def _finalize():
            row = jnp.sum(acc_ref[...], axis=1)       # single cross-lane reduce
            o_ref[0] = (row[None, :] + b_ref[0]).astype(o_ref.dtype)

    return kernel


# -----------------------------------------------------------------------------
# Wrapper
# -----------------------------------------------------------------------------
def _select_tiles(batch, n_inputs, itemsize, block_m, block_k, vmem_cap):
    # 4-8 MiB x tiles; double-buffered pair must stay well under the part's VMEM.
    tile_budget = min(8 << 20, max(1 << 20, vmem_cap // 8))
    max_tile_bytes = vmem_cap // 4

    # ---- K: prefer full-K (one reduce per M tile, no K loop, no x padding) ---
    if block_k is None:
        block_k = n_inputs if 8 * n_inputs * itemsize <= tile_budget else 8192
    block_k = int(block_k)
    if block_k >= n_inputs:
        block_k, num_k = n_inputs, 1
    else:
        block_k = max(128, (block_k // 128) * 128)     # lane-aligned K tiles
        num_k = _cdiv(n_inputs, block_k)
        if num_k == 1:
            block_k = n_inputs

    # ---- M: fill the tile budget; let v7x's 2 TCs split the parallel M axis --
    if block_m is None:
        block_m = max(8, tile_budget // (itemsize * block_k))
        if batch > 8:
            block_m = min(block_m, _round_up(_cdiv(batch, 2), 8))
    block_m = int(block_m)
    if block_m * block_k * itemsize > max_tile_bytes:      # guard v7x (64 MiB)
        block_m = max(8, (max_tile_bytes // (block_k * itemsize)) // 8 * 8)
    if block_m >= batch:
        block_m = batch                     # full-dim block: always layout-legal
    else:
        block_m = max(8, (block_m // 8) * 8)
        if block_m >= batch:
            block_m = batch
    num_m = _cdiv(batch, block_m)           # ragged last block allowed (sliced off)
    return block_m, num_m, block_k, num_k


def linear_forward(x, weight, bias, *, block_m=None, block_k=None):
    """Pallas equivalent of nn.Linear(n_inputs, 1).forward(x).

    x: (batch, n_inputs), weight: (1, n_inputs) (PyTorch layout), bias: (1,)
    returns (batch, 1)
    """
    batch, n_inputs = x.shape
    assert weight.shape == (1, n_inputs)
    assert bias.shape == (1,)

    try:
        vmem_cap = int(pltpu.get_tpu_info().vmem_capacity_bytes)
    except Exception:
        vmem_cap = 64 << 20                 # assume most restrictive part (v7x)

    itemsize = jnp.dtype(x.dtype).itemsize
    block_m, num_m, block_k, num_k = _select_tiles(
        batch, n_inputs, itemsize, block_m, block_k, vmem_cap)

    x_tile_bytes = block_m * block_k * itemsize
    vmem_limit = int(min(vmem_cap * 3 // 4,
                         max(32 << 20, 2 * x_tile_bytes + (8 << 20))))

    out_shape = jax.ShapeDtypeStruct((num_m, 1, block_m), x.dtype)
    bias_f32 = bias.astype(jnp.float32)

    if num_k == 1:
        out3 = pl.pallas_call(
            _gemv_full_k_kernel,
            out_shape=out_shape,
            grid_spec=pltpu.PrefetchScalarGridSpec(
                num_scalar_prefetch=0,
                grid=(num_m,),
                in_specs=[
                    pl.BlockSpec((block_m, n_inputs), lambda i: (i, 0)),
                    pl.BlockSpec((1, n_inputs), lambda i: (0, 0)),     # resident
                    pl.BlockSpec(memory_space=pltpu.MemorySpace.SMEM),
                ],
                out_specs=pl.BlockSpec((1, 1, block_m), lambda i: (i, 0, 0)),
            ),
            compiler_params=pltpu.CompilerParams(
                dimension_semantics=("parallel",),
                vmem_limit_bytes=vmem_limit,
            ),
        )(x, weight, bias_f32)
    else:
        k_padded = num_k * block_k
        w_p = weight
        if k_padded != n_inputs:            # weight is tiny; x is never padded
            w_p = jnp.pad(weight, ((0, 0), (0, k_padded - n_inputs)))
        kernel = _make_gemv_tiled_kernel(n_inputs, block_k)
        out3 = pl.pallas_call(
            kernel,
            out_shape=out_shape,
            grid_spec=pltpu.PrefetchScalarGridSpec(
                num_scalar_prefetch=0,
                grid=(num_m, num_k),
                in_specs=[
                    pl.BlockSpec((block_m, block_k), lambda i, k: (i, k)),
                    pl.BlockSpec((1, k_padded), lambda i, k: (0, 0)),  # resident
                    pl.BlockSpec(memory_space=pltpu.MemorySpace.SMEM),
                ],
                out_specs=pl.BlockSpec((1, 1, block_m), lambda i, k: (i, 0, 0)),
                scratch_shapes=[pltpu.VMEM((block_m, 128), jnp.float32)],
            ),
            compiler_params=pltpu.CompilerParams(
                dimension_semantics=("parallel", "arbitrary"),
                vmem_limit_bytes=vmem_limit,
            ),
        )(x, w_p, bias_f32)

    # (num_m, 1, block_m) -> row-major flatten == batch order -> (batch, 1)
    return out3.reshape(-1)[:batch].reshape(batch, 1)


def init_linear_params(key, n_inputs):
    # Match PyTorch nn.Linear default init: U(-1/sqrt(fan_in), 1/sqrt(fan_in))
    kw, kb = jax.random.split(key)
    bound = 1.0 / jnp.sqrt(jnp.float32(n_inputs))
    weight = jax.random.uniform(kw, (1, n_inputs), jnp.float32, -bound, bound)
    bias = jax.random.uniform(kb, (1,), jnp.float32, -bound, bound)
    return weight, bias


if __name__ == "__main__":
    # TODO(synk): LinearModel.train (Adam + MSE loop) is host-side training
    # logic, not part of the forward pass, and is not implemented here.
    key = jax.random.PRNGKey(0)
    k_x, k_p, k_x2, k_p2, k_x3, k_p3 = jax.random.split(key, 6)

    # 1) Small shape consistent with forward: (batch, n_inputs) -> (batch, 1).
    batch, n_inputs = 8, 32
    x = jax.random.normal(k_x, (batch, n_inputs), jnp.float32)
    weight, bias = init_linear_params(k_p, n_inputs)
    out = jax.block_until_ready(linear_forward(x, weight, bias))
    ref = x @ weight.T + bias
    assert out.shape == (batch, 1)
    assert jnp.allclose(out, ref, atol=1e-5, rtol=1e-5)

    # 2) Ragged batch + K-tiled (VPU-only accumulator) path.
    x2 = jax.random.normal(k_x2, (20, 384), jnp.float32)
    w2, b2 = init_linear_params(k_p2, 384)
    out2 = jax.block_until_ready(linear_forward(x2, w2, b2, block_k=128))
    ref2 = x2 @ w2.T + b2
    assert out2.shape == (20, 1)
    assert jnp.allclose(out2, ref2, atol=1e-4, rtol=1e-4)

    # 3) Ragged K (masked last K tile) + ragged batch, still no x padding.
    x3 = jax.random.normal(k_x3, (12, 200), jnp.float32)
    w3, b3 = init_linear_params(k_p3, 200)
    out3 = jax.block_until_ready(linear_forward(x3, w3, b3, block_k=128))
    ref3 = x3 @ w3.T + b3
    assert out3.shape == (12, 1)
    assert jnp.allclose(out3, ref3, atol=1e-4, rtol=1e-4)

    print("KERNEL_OK")
</pallas_src>

<mosaic_0001>
module attributes {stable_mosaic.version = 11 : i64} {
  func.func @_gemv_full_k_kernel(%arg0: i32, %arg1: memref<8x32xf32, #tpu.memory_space<vmem>>, %arg2: memref<1x32xf32, #tpu.memory_space<vmem>>, %arg3: memref<1xf32, #tpu.memory_space<smem>>, %arg4: memref<1x1x8xf32, #tpu.memory_space<vmem>>) attributes {dimension_semantics = [#tpu.dimension_semantics<parallel>], iteration_bounds = array<i64: 1>, scalar_prefetch = 0 : i64, scratch_operands = 0 : i64, tpu.core_type = #tpu.core_type<tc>, window_params = [{transform_indices = @transform_0, window_bounds = array<i64: 8, 32>}, {pipeline_mode = #tpu.pipeline_mode<synchronous>, transform_indices = @transform_1, window_bounds = array<i64: 1, 32>}, {transform_indices = @transform_2, window_bounds = array<i64: 1>}, {transform_indices = @transform_3, window_bounds = array<i64: 1, 1, 8>}]} {
    %c0 = arith.constant 0 : index
    %c0_0 = arith.constant 0 : index
    %0 = vector.load %arg1[%c0, %c0_0] : memref<8x32xf32, #tpu.memory_space<vmem>>, vector<8x32xf32>
    %c0_1 = arith.constant 0 : index
    %c0_2 = arith.constant 0 : index
    %1 = vector.load %arg2[%c0_1, %c0_2] : memref<1x32xf32, #tpu.memory_space<vmem>>, vector<1x32xf32>
    %2 = vector.broadcast %1 : vector<1x32xf32> to vector<8x32xf32>
    %3 = arith.mulf %0, %2 : vector<8x32xf32>
    %cst = arith.constant dense<0.000000e+00> : vector<8xf32>
    %4 = vector.multi_reduction <add>, %3, %cst [1] : vector<8x32xf32> to vector<8xf32>
    %5 = vector.shape_cast %4 : vector<8xf32> to vector<1x8xf32>
    %c0_3 = arith.constant 0 : index
    %6 = memref.load %arg3[%c0_3] : memref<1xf32, #tpu.memory_space<smem>>
    %7 = vector.broadcast %6 : f32 to vector<1x8xf32>
    %8 = arith.addf %5, %7 : vector<1x8xf32>
    %c0_4 = arith.constant 0 : index
    %c0_5 = arith.constant 0 : index
    %c0_6 = arith.constant 0 : index
    %9 = vector.load %arg4[%c0_4, %c0_5, %c0_6] : memref<1x1x8xf32, #tpu.memory_space<vmem>>, vector<1x1x8xf32>
    %10 = vector.shape_cast %9 : vector<1x1x8xf32> to vector<1x8xf32>
    %11 = vector.shape_cast %8 : vector<1x8xf32> to vector<1x1x8xf32>
    tpu.vector_store %arg4[%c0_4, %c0_5, %c0_6], %11 {strides = array<i32>} : memref<1x1x8xf32, #tpu.memory_space<vmem>>, vector<1x1x8xf32>,
    return
  }
  func.func @transform_0(%arg0: i32) -> (i32, i32) {
    %c0_i32 = arith.constant 0 : i32
    %c0_i32_0 = arith.constant 0 : i32
    return %arg0, %c0_i32 : i32, i32
  }
  func.func @transform_1(%arg0: i32) -> (i32, i32) {
    %c0_i32 = arith.constant 0 : i32
    %c0_i32_0 = arith.constant 0 : i32
    %c0_i32_1 = arith.constant 0 : i32
    return %c0_i32, %c0_i32_0 : i32, i32
  }
  func.func @transform_2(%arg0: i32) -> i32 {
    %c0_i32 = arith.constant 0 : i32
    %c0_i32_0 = arith.constant 0 : i32
    return %c0_i32 : i32
  }
  func.func @transform_3(%arg0: i32) -> (i32, i32, i32) {
    %c0_i32 = arith.constant 0 : i32
    %c0_i32_0 = arith.constant 0 : i32
    %c0_i32_1 = arith.constant 0 : i32
    return %arg0, %c0_i32, %c0_i32_0 : i32, i32, i32
  }
}

</mosaic_0001>

<llo_original>
// kernel: tpu_custom_call.1
$region0: #{tpu_custom_call.1}
  #allocation0 [shape = 'u32[]', space=smem, size = 0x4, offset = 0x4, fixed_abs, tag = 'smem constant byte address 0x4 - core index']
  #allocation1 [shape = 'u32[144,128]{1,0:T(1,128)}', space=vmem, size = 0x12000, scoped, tag = 'internal scratch']
  #allocation2 [shape = 'f32[1]{0:T(128)S(6)}', space=smem, size = 0x200, scoped, tag = 'scoped memory for tpu_custom_call.1']
  %s0 = inlined_call_operand.hbm [shape: f32[8,32], index: 0, kind: input, shape index: {}]
  %s1 = inlined_call_operand.vmem [shape: f32[1,32], index: 1, kind: input, shape index: {}]
  %s2 = inlined_call_operand.<no memory space> [shape: f32[1], index: 2, kind: input, shape index: {}]
  %s3 = inlined_call_operand.hbm [shape: f32[1,1,8], index: 3, kind: output, shape index: {}]
  %s4 = sld [smem:[#allocation0]]
  $region26: #{tpu_custom_call.1} parent=0
    _
  %s6 = ssub.s32 1, %s4
  %s7 = scalar_select 0, %s6, %s4
  %8 = sst [smem:[#allocation2]] %s2
  $region1: #{tpu_custom_call.1} parent=0
    #allocation3 [shape = 'u8[4096]{0}', space=vmem, size = 0x1000, scoped, tag = 'input window, operand 0, single buffered']
    #allocation4 [shape = 's32[1]{0}', space=sflag, size = 0x4, scoped, tag = 'scoped memory for tpu_custom_call.1']
    #allocation5 [shape = 's32[1]{0}', space=sflag, size = 0x4, scoped, tag = 'scoped memory for tpu_custom_call.1']
    #allocation6 [shape = 'u8[512]{0}', space=vmem, size = 0x400, scoped, tag = 'output window, operand 0, single buffered']
    %9 = vsyncpa [#allocation4], 0
    %10 = vsyncpa [#allocation5], 0
    // Predicated region
    $region2: #{tpu_custom_call.1} parent=1 // pred_check
      _
    $region3: #{tpu_custom_call.1} parent=1 // pred_check_branch
      %12 = sbr.rel (0) target = $region5
    $region4: #{tpu_custom_call.1} parent=1 // pred_region
      %s14 = ssub.s32 128, 128
      %15 = vsyncadd [#allocation4], %s14
      %s17 = sshll.u32 [#allocation3], 4
      %s18 = int_to_ptr.vmem [resolvable:$true] %s17
      %20 = dma.hbm_to_vmem [thread:$0]  %s0, 128, %s18, [#allocation4]
    $region5: #{tpu_custom_call.1} parent=1 // pred_fallthru
      _
    // Predicated region
    $region6: #{tpu_custom_call.1} parent=1 // pred_check
      _
    $region7: #{tpu_custom_call.1} parent=1 // pred_check_branch
      %22 = sbr.rel (0) target = $region9
    $region8: #{tpu_custom_call.1} parent=1 // pred_region
      _
    $region9: #{tpu_custom_call.1} parent=1 // pred_fallthru
      _
    // Predicated region
    $region10: #{tpu_custom_call.1} parent=1 // pred_check
      _
    $region11: #{tpu_custom_call.1} parent=1 // pred_check_branch
      %24 = sbr.rel (0) target = $region13
    $region12: #{tpu_custom_call.1} parent=1 // pred_region
      _
    $region13: #{tpu_custom_call.1} parent=1 // pred_fallthru
      _
    // Predicated region
    $region14: #{tpu_custom_call.1} parent=1 // pred_check
      _
    $region15: #{tpu_custom_call.1} parent=1 // pred_check_branch
      %26 = sbr.rel (0) target = $region17
    $region16: #{tpu_custom_call.1} parent=1 // pred_region
      %27 = dma.done [#allocation4], 128
    $region17: #{tpu_custom_call.1} parent=1 // pred_fallthru
      _
    %v28 = vld [vmem:[#allocation3] sm:$0xff]
    %v29 = vld [vmem:[%s1] sm:$0x1]
    %v31 = vlaneseq
    %v32 = vshrl.u32 %v31, 7
    %v33 = vsub.s32 0, %v32
    %v34 = vrot.slane %v29, %v33
    %v36 = vmul.f32 %v28, %v34
    %vm37 = vcmask 261120
    %v38 = vsel %vm37, %v36, 0.0
    %39 = vadd.xlane.f32.xlu0 %v38
    %v40 = vpop.xlane.xlu0 %39
    %s41 = sld [smem:[#allocation2]]
    %v42 = vstv %s41
    %v43 = vadd.f32 %v40, %v42
    %v45 = vlaneseq
    %v46 = vand.u32 %v45, 127
    %v47 = vlaneseq
    %v48 = vshrl.u32 %v47, 7
    %v49 = vsub.s32 %v46, %v48
    %v50 = vrot.slane %v43, %v49
    %vm52 = vcmask 57344
    %53 = vst.msk [vmem:[#allocation6] sm:$0x1] %vm52, %v50
    // Predicated region
    $region18: #{tpu_custom_call.1} parent=1 // pred_check
      _
    $region19: #{tpu_custom_call.1} parent=1 // pred_check_branch
      %55 = sbr.rel (0) target = $region21
    $region20: #{tpu_custom_call.1} parent=1 // pred_region
      %s57 = ssub.s32 16, 16
      %58 = vsyncadd [#allocation5], %s57
      %s60 = sshll.u32 [#allocation6], 4
      %s61 = int_to_ptr.vmem [resolvable:$true] %s60
      %63 = dma.vmem_to_hbm [thread:$0]  %s61, 16, %s3, [#allocation5]
    $region21: #{tpu_custom_call.1} parent=1 // pred_fallthru
      _
    // Predicated region
    $region22: #{tpu_custom_call.1} parent=1 // pred_check
      _
    $region23: #{tpu_custom_call.1} parent=1 // pred_check_branch
      %65 = sbr.rel (0) target = $region25
    $region24: #{tpu_custom_call.1} parent=1 // pred_region
      %66 = dma.done [#allocation5], 16
    $region25: #{tpu_custom_call.1} parent=1 // pred_fallthru
      _
    %67 = vsyncpa [#allocation4], 1
    %68 = vsyncpa [#allocation5], 1

</llo_original>
